<compile_context>
chip_gen: v7x
topology: tpu7x:2x2x1
jax: 0.10.0
libtpu: 0.0.40
codegen_flags: <defaults>
</compile_context>

<pallas_src>
import functools

import jax
import jax.numpy as jnp
from jax.experimental import pallas as pl
from jax.experimental.pallas import tpu as pltpu

ALPHA = 0.75
GAMMA = 2.0          # handled as an explicit square below
LOG_CLAMP = -100.0   # matches PyTorch's binary_cross_entropy log clamp
LANES = 128


def _focal_elementwise(p, t, binary_targets):
    """Per-element focal loss (alpha=0.75, gamma=2, probability inputs)."""
    p = p.astype(jnp.float32)
    t = t.astype(jnp.float32)
    if binary_targets:
        # Hard {0,1} targets: pt via VPU select, a single clamped log.
        pt = jnp.where(t > 0.5, p, 1.0 - p)
        bce = -jnp.maximum(jnp.log(pt), LOG_CLAMP)
    else:
        # General (soft-label-safe) path, mirrors F.binary_cross_entropy.
        log_p = jnp.maximum(jnp.log(p), LOG_CLAMP)
        log_1mp = jnp.maximum(jnp.log(1.0 - p), LOG_CLAMP)
        bce = -(t * log_p + (1.0 - t) * log_1mp)
        pt = jnp.exp(-bce)
    omp = 1.0 - pt
    return ALPHA * (omp * omp) * bce      # gamma == 2 -> explicit square (VPU)


def _focal_sum_kernel(p_ref, t_ref, out_ref, acc_ref, *,
                      rows, block_rows, num_inner, acc_rows, binary_targets):
    c = pl.program_id(0)   # outer ("parallel") axis -> 2 TensorCores on v7x
    i = pl.program_id(1)   # inner ("arbitrary") streaming/reduction axis

    @pl.when(i == 0)
    def _():
        acc_ref[...] = jnp.zeros_like(acc_ref)

    # Logical (unclamped) block index -> global row of this block's first row.
    lin = c * num_inner + i
    row0 = lin * block_rows
    row_iota = jax.lax.broadcasted_iota(jnp.int32, (block_rows, LANES), 0)
    valid = (row_iota + row0) < rows

    # Mask ragged / duplicated tail rows to (p=1, t=1): contributes exactly 0.
    p = jnp.where(valid, p_ref[...].astype(jnp.float32), 1.0)
    t = jnp.where(valid, t_ref[...].astype(jnp.float32), 1.0)

    f_loss = _focal_elementwise(p, t, binary_targets)

    # Vector accumulate over the leading (non-layout) axis only -> pure VPU
    # adds into a wide accumulator; no cross-lane work in the hot loop.
    acc_ref[...] = acc_ref[...] + f_loss.reshape(
        block_rows // acc_rows, acc_rows, LANES).sum(axis=0)

    @pl.when(i == pl.num_programs(1) - 1)
    def _():
        # Collapse to one (8,128) partial-sum tile per outer program; the final
        # cross-lane/scalar reduction happens in plain JAX on a few KiB.
        reduced = acc_ref[...].reshape(acc_rows // 8, 8, LANES).sum(axis=0)
        out_ref[...] = reduced[None]


def _sublane_granularity(dtype):
    itemsize = min(4, max(1, jnp.dtype(dtype).itemsize))
    return 8 * (4 // itemsize)   # f32 -> 8, bf16/f16 -> 16, int8/bool -> 32


def focal_loss(inputs, targets, *, max_block_rows=4096, binary_targets=False):
    """FocalLoss(alpha=0.75, gamma=2, logits=False, reduce=True).forward."""
    assert inputs.shape == targets.shape
    total_n = int(inputs.size)
    if total_n == 0:
        return jnp.float32(jnp.nan)   # torch.mean of empty -> nan

    # Native dtypes all the way to the kernel: no wrapper astype / pad copies.
    flat_p = inputs.reshape(-1)
    flat_t = targets.reshape(-1)

    gran = max(_sublane_granularity(flat_p.dtype),
               _sublane_granularity(flat_t.dtype))
    rows = total_n // LANES          # whole 128-lane rows
    aligned_n = rows * LANES

    if rows < gran:
        # Tiny input: not worth a kernel launch.
        return jnp.mean(_focal_elementwise(flat_p, flat_t, binary_targets))

    # Sub-128-lane ragged tail (rare): tiny plain-JAX correction so the kernel
    # never needs a padded copy of the full inputs.
    if aligned_n != total_n:
        tail_sum = jnp.sum(_focal_elementwise(
            flat_p[aligned_n:], flat_t[aligned_n:], binary_targets))
        p2d = flat_p[:aligned_n].reshape(rows, LANES)
        t2d = flat_t[:aligned_n].reshape(rows, LANES)
    else:
        tail_sum = jnp.float32(0.0)
        p2d = flat_p.reshape(rows, LANES)
        t2d = flat_t.reshape(rows, LANES)

    # Large lane-dense tiles: <=2 MiB f32 (1 MiB bf16) per buffer; with two
    # double-buffered inputs this stays well under every generation's scoped
    # VMEM default, so no vmem_limit override is needed.
    block_rows = min((int(max_block_rows) // gran) * gran,
                     (rows // gran) * gran)
    block_rows = max(block_rows, gran)

    n_blocks = pl.cdiv(rows, block_rows)
    # 2-way outer split: sharded across the two TensorCores on v7x via
    # "parallel"; a harmless sequential pass on single-TC v5e/v6e.
    num_outer = 2 if n_blocks >= 2 else 1
    num_inner = pl.cdiv(n_blocks, num_outer)

    acc_rows = 32
    while block_rows % acc_rows:
        acc_rows //= 2

    def in_index_map(c, i):
        # Clamp so an overhanging block (odd n_blocks) re-reads valid memory;
        # the kernel masks it to a zero contribution via its logical index.
        return (jnp.minimum(c * num_inner + i, n_blocks - 1), 0)

    kernel = functools.partial(
        _focal_sum_kernel,
        rows=rows, block_rows=block_rows, num_inner=num_inner,
        acc_rows=acc_rows, binary_targets=binary_targets)

    partial_sums = pl.pallas_call(
        kernel,
        out_shape=jax.ShapeDtypeStruct((num_outer, 8, LANES), jnp.float32),
        grid_spec=pltpu.PrefetchScalarGridSpec(
            num_scalar_prefetch=0,
            grid=(num_outer, num_inner),
            in_specs=[
                # TODO(synk): if profiling shows exposed input DMA after the
                # tile bump, add pipeline_mode=pl.Buffered(3) to these specs.
                pl.BlockSpec((block_rows, LANES), in_index_map),
                pl.BlockSpec((block_rows, LANES), in_index_map),
            ],
            out_specs=pl.BlockSpec((1, 8, LANES), lambda c, i: (c, 0, 0)),
            scratch_shapes=[pltpu.VMEM((acc_rows, LANES), jnp.float32)],
        ),
        compiler_params=pltpu.CompilerParams(
            dimension_semantics=("parallel", "arbitrary")),
    )(p2d, t2d)

    total = jnp.sum(partial_sums) + tail_sum
    return total / jnp.float32(total_n)


def focal_loss_ref(inputs, targets):
    """Plain-JAX reference mirroring the PyTorch module (reduce=True)."""
    p = inputs.astype(jnp.float32)
    t = targets.astype(jnp.float32)
    log_p = jnp.maximum(jnp.log(p), LOG_CLAMP)
    log_1mp = jnp.maximum(jnp.log(1.0 - p), LOG_CLAMP)
    bce = -(t * log_p + (1.0 - t) * log_1mp)
    pt = jnp.exp(-bce)
    return jnp.mean(ALPHA * (1.0 - pt) ** 2 * bce)


if __name__ == "__main__":
    key = jax.random.PRNGKey(0)
    k1, k2, k3, k4 = jax.random.split(key, 4)

    # Test 1: NCHW f32 probabilities, general (soft-label-safe) path.
    shape = (2, 4, 16, 16)
    inputs = jax.nn.sigmoid(jax.random.normal(k1, shape, dtype=jnp.float32))
    targets = jax.random.bernoulli(k2, 0.5, shape).astype(jnp.float32)
    loss = jax.block_until_ready(focal_loss(inputs, targets))
    ref = focal_loss_ref(inputs, targets)
    assert jnp.allclose(loss, ref, rtol=1e-5, atol=1e-6), (loss, ref)

    # Test 2: ragged size (not a multiple of 8*128) + hard-binary fast path,
    # exercising the in-kernel row mask and the JAX-side sub-128 tail fixup.
    shape2 = (2, 3, 15, 17)
    inputs2 = jax.nn.sigmoid(jax.random.normal(k3, shape2, dtype=jnp.float32))
    targets2 = jax.random.bernoulli(k4, 0.5, shape2).astype(jnp.float32)
    loss2 = jax.block_until_ready(
        focal_loss(inputs2, targets2, binary_targets=True))
    ref2 = focal_loss_ref(inputs2, targets2)
    assert jnp.allclose(loss2, ref2, rtol=1e-5, atol=1e-6), (loss2, ref2)

    # Test 3: bf16 probabilities streamed natively (half the HBM bytes).
    inputs3 = inputs.astype(jnp.bfloat16)
    loss3 = jax.block_until_ready(focal_loss(inputs3, targets))
    ref3 = focal_loss_ref(inputs3.astype(jnp.float32), targets)
    assert jnp.allclose(loss3, ref3, rtol=1e-5, atol=1e-6), (loss3, ref3)

    print("KERNEL_OK")
</pallas_src>

<mosaic_0001>
module attributes {stable_mosaic.version = 11 : i64} {
  func.func @_focal_sum_kernel(%arg0: i32, %arg1: i32, %arg2: memref<16x128xf32, #tpu.memory_space<vmem>>, %arg3: memref<16x128xf32, #tpu.memory_space<vmem>>, %arg4: memref<1x8x128xf32, #tpu.memory_space<vmem>>, %arg5: memref<16x128xf32, #tpu.memory_space<vmem>>) attributes {dimension_semantics = [#tpu.dimension_semantics<parallel>, #tpu.dimension_semantics<arbitrary>], iteration_bounds = array<i64: 1, 1>, scalar_prefetch = 0 : i64, scratch_operands = 1 : i64, tpu.core_type = #tpu.core_type<tc>, window_params = [{transform_indices = @transform_0, window_bounds = array<i64: 16, 128>}, {transform_indices = @transform_1, window_bounds = array<i64: 16, 128>}, {transform_indices = @transform_2, window_bounds = array<i64: 1, 8, 128>}]} {
    %c0_i32 = arith.constant 0 : i32
    %0 = arith.cmpi eq, %arg1, %c0_i32 : i32
    %1 = arith.extui %0 : i1 to i32
    %c0_i32_0 = arith.constant 0 : i32
    %2 = arith.cmpi ne, %1, %c0_i32_0 : i32
    scf.if %2 {
      %cst_21 = arith.constant 0.000000e+00 : f32
      %49 = vector.broadcast %cst_21 : f32 to vector<16x128xf32>
      %c0_22 = arith.constant 0 : index
      %c0_23 = arith.constant 0 : index
      %50 = vector.load %arg5[%c0_22, %c0_23] : memref<16x128xf32, #tpu.memory_space<vmem>>, vector<16x128xf32>
      tpu.vector_store %arg5[%c0_22, %c0_23], %49 {strides = array<i32>} : memref<16x128xf32, #tpu.memory_space<vmem>>, vector<16x128xf32>,
    } else {
    }
    %c1_i32 = arith.constant 1 : i32
    %3 = arith.muli %arg0, %c1_i32 : i32
    %4 = arith.addi %3, %arg1 : i32
    %c16_i32 = arith.constant 16 : i32
    %5 = arith.muli %4, %c16_i32 : i32
    %6 = tpu.iota {dimensions = array<i32: 0>} : vector<16x128xi32>
    %7 = vector.broadcast %5 : i32 to vector<16x128xi32>
    %8 = arith.addi %6, %7 : vector<16x128xi32>
    %c16_i32_1 = arith.constant 16 : i32
    %9 = vector.broadcast %c16_i32_1 : i32 to vector<16x128xi32>
    %10 = arith.cmpi slt, %8, %9 : vector<16x128xi32>
    %c0 = arith.constant 0 : index
    %c0_2 = arith.constant 0 : index
    %11 = vector.load %arg2[%c0, %c0_2] : memref<16x128xf32, #tpu.memory_space<vmem>>, vector<16x128xf32>
    %cst = arith.constant 1.000000e+00 : f32
    %12 = vector.broadcast %cst : f32 to vector<16x128xf32>
    %13 = arith.select %10, %11, %12 : vector<16x128xi1>, vector<16x128xf32>
    %c0_3 = arith.constant 0 : index
    %c0_4 = arith.constant 0 : index
    %14 = vector.load %arg3[%c0_3, %c0_4] : memref<16x128xf32, #tpu.memory_space<vmem>>, vector<16x128xf32>
    %cst_5 = arith.constant 1.000000e+00 : f32
    %15 = vector.broadcast %cst_5 : f32 to vector<16x128xf32>
    %16 = arith.select %10, %14, %15 : vector<16x128xi1>, vector<16x128xf32>
    %17 = math.log %13 : vector<16x128xf32>
    %cst_6 = arith.constant -1.000000e+02 : f32
    %18 = vector.broadcast %cst_6 : f32 to vector<16x128xf32>
    %19 = arith.maximumf %17, %18 : vector<16x128xf32>
    %cst_7 = arith.constant 1.000000e+00 : f32
    %20 = vector.broadcast %cst_7 : f32 to vector<16x128xf32>
    %21 = arith.subf %20, %13 : vector<16x128xf32>
    %22 = math.log %21 : vector<16x128xf32>
    %cst_8 = arith.constant -1.000000e+02 : f32
    %23 = vector.broadcast %cst_8 : f32 to vector<16x128xf32>
    %24 = arith.maximumf %22, %23 : vector<16x128xf32>
    %25 = arith.mulf %16, %19 : vector<16x128xf32>
    %cst_9 = arith.constant 1.000000e+00 : f32
    %26 = vector.broadcast %cst_9 : f32 to vector<16x128xf32>
    %27 = arith.subf %26, %16 : vector<16x128xf32>
    %28 = arith.mulf %27, %24 : vector<16x128xf32>
    %29 = arith.addf %25, %28 : vector<16x128xf32>
    %cst_10 = arith.constant 0.000000e+00 : f32
    %30 = vector.broadcast %cst_10 : f32 to vector<16x128xf32>
    %31 = arith.subf %30, %29 : vector<16x128xf32>
    %cst_11 = arith.constant 0.000000e+00 : f32
    %32 = vector.broadcast %cst_11 : f32 to vector<16x128xf32>
    %33 = arith.subf %32, %31 : vector<16x128xf32>
    %34 = math.exp %33 : vector<16x128xf32>
    %cst_12 = arith.constant 1.000000e+00 : f32
    %35 = vector.broadcast %cst_12 : f32 to vector<16x128xf32>
    %36 = arith.subf %35, %34 : vector<16x128xf32>
    %37 = arith.mulf %36, %36 : vector<16x128xf32>
    %cst_13 = arith.constant 7.500000e-01 : f32
    %38 = vector.broadcast %cst_13 : f32 to vector<16x128xf32>
    %39 = arith.mulf %38, %37 : vector<16x128xf32>
    %40 = arith.mulf %39, %31 : vector<16x128xf32>
    %c0_14 = arith.constant 0 : index
    %c0_15 = arith.constant 0 : index
    %41 = vector.load %arg5[%c0_14, %c0_15] : memref<16x128xf32, #tpu.memory_space<vmem>>, vector<16x128xf32>
    %42 = vector.shape_cast %40 : vector<16x128xf32> to vector<1x16x128xf32>
    %cst_16 = arith.constant dense<0.000000e+00> : vector<16x128xf32>
    %43 = vector.multi_reduction <add>, %42, %cst_16 [0] : vector<1x16x128xf32> to vector<16x128xf32>
    %44 = arith.addf %41, %43 : vector<16x128xf32>
    %c0_17 = arith.constant 0 : index
    %c0_18 = arith.constant 0 : index
    %45 = vector.load %arg5[%c0_17, %c0_18] : memref<16x128xf32, #tpu.memory_space<vmem>>, vector<16x128xf32>
    tpu.vector_store %arg5[%c0_17, %c0_18], %44 {strides = array<i32>} : memref<16x128xf32, #tpu.memory_space<vmem>>, vector<16x128xf32>,
    %c0_i32_19 = arith.constant 0 : i32
    %46 = arith.cmpi eq, %arg1, %c0_i32_19 : i32
    %47 = arith.extui %46 : i1 to i32
    %c0_i32_20 = arith.constant 0 : i32
    %48 = arith.cmpi ne, %47, %c0_i32_20 : i32
    scf.if %48 {
      %c0_21 = arith.constant 0 : index
      %c0_22 = arith.constant 0 : index
      %49 = vector.load %arg5[%c0_21, %c0_22] : memref<16x128xf32, #tpu.memory_space<vmem>>, vector<16x128xf32>
      %50 = vector.shape_cast %49 : vector<16x128xf32> to vector<2x8x128xf32>
      %cst_23 = arith.constant dense<0.000000e+00> : vector<8x128xf32>
      %51 = vector.multi_reduction <add>, %50, %cst_23 [0] : vector<2x8x128xf32> to vector<8x128xf32>
      %52 = vector.shape_cast %51 : vector<8x128xf32> to vector<1x8x128xf32>
      %c0_24 = arith.constant 0 : index
      %c0_25 = arith.constant 0 : index
      %c0_26 = arith.constant 0 : index
      %53 = vector.load %arg4[%c0_24, %c0_25, %c0_26] : memref<1x8x128xf32, #tpu.memory_space<vmem>>, vector<1x8x128xf32>
      tpu.vector_store %arg4[%c0_24, %c0_25, %c0_26], %52 {strides = array<i32>} : memref<1x8x128xf32, #tpu.memory_space<vmem>>, vector<1x8x128xf32>,
    } else {
    }
    return
  }
  func.func @transform_0(%arg0: i32, %arg1: i32) -> (i32, i32) {
    %c1_i32 = arith.constant 1 : i32
    %0 = arith.muli %arg0, %c1_i32 : i32
    %1 = arith.addi %0, %arg1 : i32
    %c0_i32 = arith.constant 0 : i32
    %2 = arith.minsi %1, %c0_i32 : i32
    %c0_i32_0 = arith.constant 0 : i32
    %c0_i32_1 = arith.constant 0 : i32
    return %2, %c0_i32_0 : i32, i32
  }
  func.func @transform_1(%arg0: i32, %arg1: i32) -> (i32, i32) {
    %c1_i32 = arith.constant 1 : i32
    %0 = arith.muli %arg0, %c1_i32 : i32
    %1 = arith.addi %0, %arg1 : i32
    %c0_i32 = arith.constant 0 : i32
    %2 = arith.minsi %1, %c0_i32 : i32
    %c0_i32_0 = arith.constant 0 : i32
    %c0_i32_1 = arith.constant 0 : i32
    return %2, %c0_i32_0 : i32, i32
  }
  func.func @transform_2(%arg0: i32, %arg1: i32) -> (i32, i32, i32) {
    %c0_i32 = arith.constant 0 : i32
    %c0_i32_0 = arith.constant 0 : i32
    %c0_i32_1 = arith.constant 0 : i32
    return %arg0, %c0_i32, %c0_i32_0 : i32, i32, i32
  }
}

</mosaic_0001>

<llo_original>
// kernel: tpu_custom_call.1
$region0: #{tpu_custom_call.1}
  #allocation0 [shape = 'u32[]', space=smem, size = 0x4, offset = 0x4, fixed_abs, tag = 'smem constant byte address 0x4 - core index']
  #allocation1 [shape = 'u32[144,128]{1,0:T(1,128)}', space=vmem, size = 0x12000, scoped, tag = 'internal scratch']
  #allocation2 [shape = 'f32[16,128]{1,0:T(8,128)}', space=vmem, size = 0x2000, scoped, tag = 'scratch operand']
  %s0 = inlined_call_operand.hbm [shape: f32[16,128], index: 0, kind: input, shape index: {}]
  %s1 = inlined_call_operand.hbm [shape: f32[16,128], index: 1, kind: input, shape index: {}]
  %s2 = inlined_call_operand.hbm [shape: f32[1,8,128], index: 2, kind: output, shape index: {}]
  %s3 = sld [smem:[#allocation0]]
  $region34: #{tpu_custom_call.1} parent=0
    _
  %s5 = ssub.s32 1, %s3
  %s6 = scalar_select 0, %s5, %s3
  $region1: #{tpu_custom_call.1} parent=0
    #allocation3 [shape = 'u8[8192]{0}', space=vmem, size = 0x2000, scoped, tag = 'input window, operand 0, single buffered']
    #allocation4 [shape = 's32[1]{0}', space=sflag, size = 0x4, scoped, tag = 'scoped memory for tpu_custom_call.1']
    #allocation5 [shape = 's32[1]{0}', space=sflag, size = 0x4, scoped, tag = 'scoped memory for tpu_custom_call.1']
    #allocation6 [shape = 'u8[8192]{0}', space=vmem, size = 0x2000, scoped, tag = 'input window, operand 1, single buffered']
    #allocation7 [shape = 's32[1]{0}', space=sflag, size = 0x4, scoped, tag = 'scoped memory for tpu_custom_call.1']
    #allocation8 [shape = 'u8[4096]{0}', space=vmem, size = 0x1000, scoped, tag = 'output window, operand 0, single buffered']
    %7 = vsyncpa [#allocation4], 0
    %8 = vsyncpa [#allocation7], 0
    %9 = vsyncpa [#allocation5], 0
    // Predicated region
    $region2: #{tpu_custom_call.1} parent=1 // pred_check
      _
    $region3: #{tpu_custom_call.1} parent=1 // pred_check_branch
      %11 = sbr.rel (0) target = $region5
    $region4: #{tpu_custom_call.1} parent=1 // pred_region
      %s12 = sadd.s32 0, 0
      %p13 = scmp.lt.s32.totalorder %s12, 0
      %s14 = scalar_select %p13, %s12, 0
      %s15 = smul.u32 2, %s14
      %s17 = ssub.s32 256, 256
      %18 = vsyncadd [#allocation4], %s17
      %s19 = smul.addr %s15, 128
      %s20 = scalar_lea.hbm %s0, %s19
      %s21 = sshll.u32 [#allocation3], 4
      %s22 = int_to_ptr.vmem [resolvable:$true] %s21
      %27 = dma.hbm_to_vmem [thread:$0]  %s20, 256, %s22, [#allocation4], 128, 128, 8
    $region5: #{tpu_custom_call.1} parent=1 // pred_fallthru
      _
    // Predicated region
    $region6: #{tpu_custom_call.1} parent=1 // pred_check
      _
    $region7: #{tpu_custom_call.1} parent=1 // pred_check_branch
      %29 = sbr.rel (0) target = $region9
    $region8: #{tpu_custom_call.1} parent=1 // pred_region
      %s30 = sadd.s32 0, 0
      %p31 = scmp.lt.s32.totalorder %s30, 0
      %s32 = scalar_select %p31, %s30, 0
      %s33 = smul.u32 2, %s32
      %s35 = ssub.s32 256, 256
      %36 = vsyncadd [#allocation7], %s35
      %s37 = smul.addr %s33, 128
      %s38 = scalar_lea.hbm %s1, %s37
      %s39 = sshll.u32 [#allocation6], 4
      %s40 = int_to_ptr.vmem [resolvable:$true] %s39
      %45 = dma.hbm_to_vmem [thread:$0]  %s38, 256, %s40, [#allocation7], 128, 128, 8
    $region9: #{tpu_custom_call.1} parent=1 // pred_fallthru
      _
    // Predicated region
    $region10: #{tpu_custom_call.1} parent=1 // pred_check
      _
    $region11: #{tpu_custom_call.1} parent=1 // pred_check_branch
      %47 = sbr.rel (0) target = $region13
    $region12: #{tpu_custom_call.1} parent=1 // pred_region
      %48 = dma.done [#allocation4], 256
    $region13: #{tpu_custom_call.1} parent=1 // pred_fallthru
      _
    // Predicated region
    $region14: #{tpu_custom_call.1} parent=1 // pred_check
      _
    $region15: #{tpu_custom_call.1} parent=1 // pred_check_branch
      %50 = sbr.rel (0) target = $region17
    $region16: #{tpu_custom_call.1} parent=1 // pred_region
      %51 = dma.done [#allocation7], 256
    $region17: #{tpu_custom_call.1} parent=1 // pred_fallthru
      _
    %s52 = sadd.s32 0, 0
    %p53 = scmp.lt.s32.totalorder %s52, 0
    %s54 = scalar_select %p53, %s52, 0
    %s55 = smul.u32 2, %s54
    %s56 = sadd.s32 0, 0
    %p57 = scmp.lt.s32.totalorder %s56, 0
    %s58 = scalar_select %p57, %s56, 0
    %s59 = smul.u32 2, %s58
    %p60 = scmp.eq.s32.totalorder 0, 0
    // Predicated region
    $region18: #{tpu_custom_call.1} parent=1 // pred_check
      %p61 = pneg %p60
    $region19: #{tpu_custom_call.1} parent=1 // pred_check_branch
      %63 = sbr.rel (%p61) target = $region21
    $region20: #{tpu_custom_call.1} parent=1 // pred_region
      %64 = vst [vmem:[#allocation2] sm:$0xff] 0.0
      %65 = vst [vmem:[#allocation2 + $0x8] sm:$0xff] 0.0
    $region21: #{tpu_custom_call.1} parent=1 // pred_fallthru
      _
    %s66 = sadd.s32 0, 0
    %s67 = smul.u32 %s66, 16
    %v68 = vlaneseq
    %v69 = vshrl.u32 %v68, 7
    %v70 = vadd.s32 %v69, 8
    %v71 = vstv %s67
    %v72 = vadd.s32 %v69, %v71
    %v73 = vadd.s32 %v70, %v71
    %vm74 = vcmp.lt.s32.totalorder %v72, 16
    %vm75 = vcmp.lt.s32.totalorder %v73, 16
    %v76 = vld [vmem:[#allocation3] sm:$0xff]
    %v77 = vld [vmem:[#allocation3 + $0x8] sm:$0xff]
    %v78 = vsel %vm74, %v76, 1.0
    %v79 = vsel %vm75, %v77, 1.0
    %v80 = vld [vmem:[#allocation6] sm:$0xff]
    %v81 = vld [vmem:[#allocation6 + $0x8] sm:$0xff]
    %v82 = vsel %vm74, %v80, 1.0
    %v83 = vsel %vm75, %v81, 1.0
    %v84 = vlog2.pop %v78
    %v85 = vmul.f32 %v84, 0.6931472
    %v86 = vlog2.pop %v79
    %v87 = vmul.f32 %v86, 0.6931472
    %v88 = vmax.f32 %v85, -100.0
    %v89 = vmax.f32 %v87, -100.0
    %v90 = vsub.f32 1.0, %v78
    %v91 = vsub.f32 1.0, %v79
    %v92 = vlog2.pop %v90
    %v93 = vmul.f32 %v92, 0.6931472
    %v94 = vlog2.pop %v91
    %v95 = vmul.f32 %v94, 0.6931472
    %v96 = vmax.f32 %v93, -100.0
    %v97 = vmax.f32 %v95, -100.0
    %v98 = vmul.f32 %v82, %v88
    %v99 = vmul.f32 %v83, %v89
    %v100 = vsub.f32 1.0, %v82
    %v101 = vsub.f32 1.0, %v83
    %v102 = vmul.f32 %v100, %v96
    %v103 = vmul.f32 %v101, %v97
    %v104 = vadd.f32 %v98, %v102
    %v105 = vadd.f32 %v99, %v103
    %v106 = vsub.f32 0.0, %v104
    %v107 = vsub.f32 0.0, %v105
    %v108 = vsub.f32 0.0, %v106
    %v109 = vsub.f32 0.0, %v107
    %v110 = vmul.f32 %v108, 1.442695
    %v111 = vpow.pop %v110
    %v112 = vmul.f32 %v109, 1.442695
    %v113 = vpow.pop %v112
    %v114 = vsub.f32 1.0, %v111
    %v115 = vsub.f32 1.0, %v113
    %v116 = vmul.f32 %v114, %v114
    %v117 = vmul.f32 %v115, %v115
    %v118 = vmul.f32 %v116, 0.75
    %v119 = vmul.f32 %v117, 0.75
    %v120 = vmul.f32 %v118, %v106
    %v121 = vmul.f32 %v119, %v107
    %v122 = vld [vmem:[#allocation2] sm:$0xff]
    %v123 = vld [vmem:[#allocation2 + $0x8] sm:$0xff]
    %v124 = vadd.f32 %v120, 0.0
    %v125 = vadd.f32 %v121, 0.0
    %v126 = vadd.f32 %v122, %v124
    %v127 = vadd.f32 %v123, %v125
    %128 = vst [vmem:[#allocation2] sm:$0xff] %v126
    %129 = vst [vmem:[#allocation2 + $0x8] sm:$0xff] %v127
    // Predicated region
    $region22: #{tpu_custom_call.1} parent=1 // pred_check
      %p130 = pneg %p60
    $region23: #{tpu_custom_call.1} parent=1 // pred_check_branch
      %132 = sbr.rel (%p130) target = $region25
    $region24: #{tpu_custom_call.1} parent=1 // pred_region
      %v133 = vld [vmem:[#allocation2] sm:$0xff]
      %v134 = vld [vmem:[#allocation2 + $0x8] sm:$0xff]
      %v135 = vadd.f32 %v133, %v134
      %136 = vst [vmem:[#allocation8] sm:$0xff] %v135
    $region25: #{tpu_custom_call.1} parent=1 // pred_fallthru
      _
    // Predicated region
    $region26: #{tpu_custom_call.1} parent=1 // pred_check
      _
    $region27: #{tpu_custom_call.1} parent=1 // pred_check_branch
      %138 = sbr.rel (0) target = $region29
    $region28: #{tpu_custom_call.1} parent=1 // pred_region
      %s140 = ssub.s32 128, 128
      %141 = vsyncadd [#allocation5], %s140
      %s143 = sshll.u32 [#allocation8], 4
      %s144 = int_to_ptr.vmem [resolvable:$true] %s143
      %146 = dma.vmem_to_hbm [thread:$0]  %s144, 128, %s2, [#allocation5]
    $region29: #{tpu_custom_call.1} parent=1 // pred_fallthru
      _
    // Predicated region
    $region30: #{tpu_custom_call.1} parent=1 // pred_check
      _
    $region31: #{tpu_custom_call.1} parent=1 // pred_check_branch
      %148 = sbr.rel (0) target = $region33
    $region32: #{tpu_custom_call.1} parent=1 // pred_region
      %149 = dma.done [#allocation5], 128
    $region33: #{tpu_custom_call.1} parent=1 // pred_fallthru
      _
    %150 = vsyncpa [#allocation4], 1
    %151 = vsyncpa [#allocation7], 1
    %152 = vsyncpa [#allocation5], 1

</llo_original>
